<compile_context>
chip_gen: v7x
topology: tpu7x:2x2x1
jax: 0.10.0
libtpu: 0.0.40
codegen_flags: <defaults>
</compile_context>

<pallas_src>
import jax
import jax.numpy as jnp
from jax import lax
from jax.experimental import pallas as pl
from jax.experimental.pallas import tpu as pltpu

VOCAB = 27            # bigram vocab size (26 letters + '.')

_LANE = 128           # vreg lane width
_SUBLANE = 8          # vreg sublane height
_F32 = 4              # bytes


def _ceil_div(a: int, b: int) -> int:
    return -(-a // b)


def _vmem_limit_bytes() -> int:
    """Scoped-VMEM limit for this kernel: half of physical VMEM, capped at 64 MiB.

    -> 64 MiB on v5e/v6e (128 MiB physical), 32 MiB on v7x (64 MiB physical).
    """
    phys = 64 * 1024 * 1024
    try:
        info = pltpu.get_tpu_info()
        phys = int(getattr(info, "vmem_capacity_bytes", phys)) or phys
    except Exception:
        pass
    return int(min(phys // 2, 64 * 1024 * 1024))


def _pick_tile(n: int, requested, max_rows: int, mult: int):
    """Pick a batch-tile size and grid length.

    The tile is a multiple of `mult` unless it covers the whole batch dim
    (a full-extent block is always legal).  Large batches are capped so the
    grid keeps >= ~8 steps (v7x 2-TensorCore split), but the tile is never
    shrunk below 1024 rows just to manufacture steps.
    """
    cand = max_rows if requested is None else min(int(requested), max_rows)
    cand = max(cand, mult)
    step_cap = max(1024, _ceil_div(n, 8))
    cand = min(cand, step_cap)
    if cand >= n:
        return n, 1
    cand = max(mult, (cand // mult) * mult)
    return cand, _ceil_div(n, cand)


# ---------------------------------------------------------------------------
# Dense path: faithful to the module's forward(x) = x @ W
# ---------------------------------------------------------------------------
def _dense_matmul_kernel(x_ref, w_ref, o_ref):
    # (tn, 27) @ (27, 27) -> (tn, 27), f32 accumulation on the MXU.
    o_ref[...] = jnp.dot(
        x_ref[...], w_ref[...], preferred_element_type=jnp.float32
    ).astype(o_ref.dtype)


def bigram_forward(x: jax.Array, w: jax.Array, *, tile_n: int | None = None) -> jax.Array:
    """Pallas equivalent of BigramClassifier.forward: x @ W (dense (N, 27) f32 input)."""
    n = x.shape[0]
    vmem_limit = _vmem_limit_bytes()

    # Real VMEM cost: a (tn, 27) f32 block lane-pads to (tn, 128) = 512 B/row/buffer;
    # x and out are each double-buffered -> 2 KiB per row of tile.
    bytes_per_row = 2 * 2 * _LANE * _F32
    budget = (vmem_limit * 3) // 4          # headroom for W + compiler scratch
    max_rows = max(_SUBLANE, (budget // bytes_per_row) // _SUBLANE * _SUBLANE)
    tn, steps = _pick_tile(n, tile_n, max_rows, _SUBLANE)

    cost = pl.CostEstimate(
        flops=2 * n * VOCAB * VOCAB,
        transcendentals=0,
        bytes_accessed=_F32 * (n * VOCAB + VOCAB * VOCAB + n * VOCAB),
    )

    return pl.pallas_call(
        _dense_matmul_kernel,
        out_shape=jax.ShapeDtypeStruct((n, VOCAB), jnp.float32),
        grid_spec=pl.GridSpec(
            grid=(steps,),
            in_specs=[
                pl.BlockSpec((tn, VOCAB), lambda i: (i, 0)),      # x batch tile
                pl.BlockSpec((VOCAB, VOCAB), lambda i: (0, 0)),   # W resident
            ],
            out_specs=pl.BlockSpec((tn, VOCAB), lambda i: (i, 0)),
        ),
        compiler_params=pltpu.CompilerParams(
            dimension_semantics=("parallel",),                    # v7x megacore split
            vmem_limit_bytes=vmem_limit,
        ),
        cost_estimate=cost,
    )(x, w)


# ---------------------------------------------------------------------------
# Index fast path (preferred): out^T = W^T @ one_hot(idx)^T, batch on lane axis
# ---------------------------------------------------------------------------
def _onehot_matmul_t_kernel(idx_ref, wt_ref, ot_ref):
    # idx_ref: (1, tn) int32, wt_ref: (27, 27) = W^T, ot_ref: (27, tn) = out^T.
    idx = idx_ref[...]
    tn = idx.shape[1]
    rows = lax.broadcasted_iota(jnp.int32, (VOCAB, tn), 0)
    one_hot_t = (rows == idx).astype(jnp.float32)                 # lane-dense one-hot^T
    ot_ref[...] = jnp.dot(
        wt_ref[...], one_hot_t, preferred_element_type=jnp.float32
    ).astype(ot_ref.dtype)


def bigram_forward_from_indices(idx: jax.Array, w: jax.Array, *,
                                tile_n: int | None = None,
                                transposed_output: bool = False) -> jax.Array:
    """Equivalent to one_hot(idx, 27).float() @ W, reading only int32 indices.

    Precondition (as with torch.nn.functional.one_hot): all idx in [0, 27).
    Out-of-range indices silently yield all-zero output rows here instead of raising.

    With transposed_output=True the kernel's native (27, N) layout is returned
    directly (lane-dense; fuse the transpose into the consumer, e.g. softmax/CE
    over the vocab axis works on either layout).  Default returns (N, 27) for
    drop-in module semantics at the cost of one extra XLA transpose pass.
    """
    n = idx.shape[0]
    vmem_limit = _vmem_limit_bytes()

    # Per batch element on the lane axis: idx (1->8 sublanes, tn) = 32 B and
    # out^T (27->32 sublanes, tn) = 128 B, both double-buffered -> 320 B/element.
    bytes_per_col = 2 * (_SUBLANE + 32) * _F32
    budget = (vmem_limit * 3) // 4
    max_cols = max(_LANE, (budget // bytes_per_col) // _LANE * _LANE)
    tn, steps = _pick_tile(n, tile_n, max_cols, _LANE)

    idx_row = idx.astype(jnp.int32).reshape(1, n)                 # lane-dense indices
    wt = jnp.transpose(w)                                         # tiny (27,27), negligible

    cost = pl.CostEstimate(
        flops=2 * n * VOCAB * VOCAB,
        transcendentals=0,
        bytes_accessed=_F32 * (n + VOCAB * VOCAB + n * VOCAB),
    )

    out_t = pl.pallas_call(
        _onehot_matmul_t_kernel,
        out_shape=jax.ShapeDtypeStruct((VOCAB, n), jnp.float32),
        grid_spec=pl.GridSpec(
            grid=(steps,),
            in_specs=[
                pl.BlockSpec((1, tn), lambda i: (0, i)),          # idx tile (lane axis)
                pl.BlockSpec((VOCAB, VOCAB), lambda i: (0, 0)),   # W^T resident
            ],
            out_specs=pl.BlockSpec((VOCAB, tn), lambda i: (0, i)),
        ),
        compiler_params=pltpu.CompilerParams(
            dimension_semantics=("parallel",),
            vmem_limit_bytes=vmem_limit,
        ),
        cost_estimate=cost,
    )(idx_row, wt)

    if transposed_output:
        return out_t
    return jnp.transpose(out_t)


if __name__ == "__main__":
    key = jax.random.PRNGKey(0)
    k_w, k_x, k_x2 = jax.random.split(key, 3)

    # Deterministic parameter init: W ~ N(0, 1), shape (27, 27)
    # (mirrors torch.randn((27, 27)) in __init__; synthetic, not a checkpoint).
    W = jax.random.normal(k_w, (VOCAB, VOCAB), dtype=jnp.float32)

    # Small example batch: one-hot encoded bigram inputs (x = F.one_hot(idx, 27).float()).
    batch = 8
    idx = jax.random.randint(k_x, (batch,), 0, VOCAB)
    x = jax.nn.one_hot(idx, VOCAB, dtype=jnp.float32)
    ref = x @ W

    out_dense = jax.block_until_ready(bigram_forward(x, W))
    out_fast = jax.block_until_ready(bigram_forward_from_indices(idx, W))
    out_fast_t = jax.block_until_ready(
        bigram_forward_from_indices(idx, W, transposed_output=True))

    assert out_dense.shape == (batch, VOCAB)
    assert jnp.allclose(out_dense, ref, atol=1e-5, rtol=1e-5)
    assert jnp.allclose(out_fast, ref, atol=1e-5, rtol=1e-5)
    assert jnp.allclose(out_fast_t, ref.T, atol=1e-5, rtol=1e-5)

    # Exercise the multi-tile / ragged-final-tile path (grid > 1, partial last block).
    n2 = 1000
    idx2 = jax.random.randint(k_x2, (n2,), 0, VOCAB)
    x2 = jax.nn.one_hot(idx2, VOCAB, dtype=jnp.float32)
    ref2 = x2 @ W
    out2 = jax.block_until_ready(bigram_forward(x2, W, tile_n=256))
    out2_fast = jax.block_until_ready(bigram_forward_from_indices(idx2, W, tile_n=256))
    assert jnp.allclose(out2, ref2, atol=1e-5, rtol=1e-5)
    assert jnp.allclose(out2_fast, ref2, atol=1e-5, rtol=1e-5)

    print("KERNEL_OK")
</pallas_src>

<mosaic_0001>
module attributes {stable_mosaic.version = 11 : i64} {
  func.func @_dense_matmul_kernel(%arg0: i32, %arg1: memref<8x27xf32, #tpu.memory_space<vmem>>, %arg2: memref<27x27xf32, #tpu.memory_space<vmem>>, %arg3: memref<8x27xf32, #tpu.memory_space<vmem>>) attributes {dimension_semantics = [#tpu.dimension_semantics<parallel>], iteration_bounds = array<i64: 1>, scalar_prefetch = 0 : i64, scratch_operands = 0 : i64, tpu.core_type = #tpu.core_type<tc>, window_params = [{transform_indices = @transform_0, window_bounds = array<i64: 8, 27>}, {pipeline_mode = #tpu.pipeline_mode<synchronous>, transform_indices = @transform_1, window_bounds = array<i64: 27, 27>}, {transform_indices = @transform_2, window_bounds = array<i64: 8, 27>}]} {
    %c0 = arith.constant 0 : index
    %c0_0 = arith.constant 0 : index
    %0 = vector.load %arg1[%c0, %c0_0] : memref<8x27xf32, #tpu.memory_space<vmem>>, vector<8x27xf32>
    %c0_1 = arith.constant 0 : index
    %c0_2 = arith.constant 0 : index
    %1 = vector.load %arg2[%c0_1, %c0_2] : memref<27x27xf32, #tpu.memory_space<vmem>>, vector<27x27xf32>
    %cst = arith.constant dense<0.000000e+00> : vector<8x27xf32>
    %2 = tpu.matmul %0, %1, %cst {dimension_numbers = #tpu.dot_dimension_numbers<[1], [0], [0], [1], [0, 0, 1, 1], [], []>} : vector<8x27xf32>, vector<27x27xf32>, vector<8x27xf32> -> vector<8x27xf32>
    %c0_3 = arith.constant 0 : index
    %c0_4 = arith.constant 0 : index
    %3 = vector.load %arg3[%c0_3, %c0_4] : memref<8x27xf32, #tpu.memory_space<vmem>>, vector<8x27xf32>
    tpu.vector_store %arg3[%c0_3, %c0_4], %2 {strides = array<i32>} : memref<8x27xf32, #tpu.memory_space<vmem>>, vector<8x27xf32>,
    return
  }
  func.func @transform_0(%arg0: i32) -> (i32, i32) {
    %c0_i32 = arith.constant 0 : i32
    %c0_i32_0 = arith.constant 0 : i32
    return %arg0, %c0_i32 : i32, i32
  }
  func.func @transform_1(%arg0: i32) -> (i32, i32) {
    %c0_i32 = arith.constant 0 : i32
    %c0_i32_0 = arith.constant 0 : i32
    %c0_i32_1 = arith.constant 0 : i32
    return %c0_i32, %c0_i32_0 : i32, i32
  }
  func.func @transform_2(%arg0: i32) -> (i32, i32) {
    %c0_i32 = arith.constant 0 : i32
    %c0_i32_0 = arith.constant 0 : i32
    return %arg0, %c0_i32 : i32, i32
  }
}

</mosaic_0001>

<llo_original>
// kernel: tpu_custom_call.1
$region0: #{tpu_custom_call.1}
  #allocation0 [shape = 'u32[]', space=smem, size = 0x4, offset = 0x4, fixed_abs, tag = 'smem constant byte address 0x4 - core index']
  #allocation1 [shape = 'u32[144,128]{1,0:T(1,128)}', space=vmem, size = 0x12000, scoped, tag = 'internal scratch']
  %s0 = inlined_call_operand.hbm [shape: f32[8,27], index: 0, kind: input, shape index: {}]
  %s1 = inlined_call_operand.hbm [shape: f32[27,27], index: 1, kind: input, shape index: {}]
  %s2 = inlined_call_operand.hbm [shape: f32[8,27], index: 2, kind: output, shape index: {}]
  %s3 = sld [smem:[#allocation0]]
  $region26: #{tpu_custom_call.1} parent=0
    _
  %s5 = ssub.s32 1, %s3
  %s6 = scalar_select 0, %s5, %s3
  $region1: #{tpu_custom_call.1} parent=0
    #allocation2 [shape = 'u8[4096]{0}', space=vmem, size = 0x1000, scoped, tag = 'input window, operand 0, single buffered']
    #allocation3 [shape = 's32[1]{0}', space=sflag, size = 0x4, scoped, tag = 'scoped memory for tpu_custom_call.1']
    #allocation4 [shape = 's32[1]{0}', space=sflag, size = 0x4, scoped, tag = 'scoped memory for tpu_custom_call.1']
    #allocation5 [shape = 'u8[16384]{0}', space=vmem, size = 0x4000, scoped, tag = 'input window, operand 1, single buffered']
    #allocation6 [shape = 's32[1]{0}', space=sflag, size = 0x4, scoped, tag = 'scoped memory for tpu_custom_call.1']
    #allocation7 [shape = 'u8[4096]{0}', space=vmem, size = 0x1000, scoped, tag = 'output window, operand 0, single buffered']
    %7 = vsyncpa [#allocation3], 0
    %8 = vsyncpa [#allocation6], 0
    %9 = vsyncpa [#allocation4], 0
    // Predicated region
    $region2: #{tpu_custom_call.1} parent=1 // pred_check
      _
    $region3: #{tpu_custom_call.1} parent=1 // pred_check_branch
      %11 = sbr.rel (0) target = $region5
    $region4: #{tpu_custom_call.1} parent=1 // pred_region
      %s13 = ssub.s32 128, 128
      %14 = vsyncadd [#allocation3], %s13
      %s16 = sshll.u32 [#allocation2], 4
      %s17 = int_to_ptr.vmem [resolvable:$true] %s16
      %19 = dma.hbm_to_vmem [thread:$0]  %s0, 128, %s17, [#allocation3]
    $region5: #{tpu_custom_call.1} parent=1 // pred_fallthru
      _
    // Predicated region
    $region6: #{tpu_custom_call.1} parent=1 // pred_check
      _
    $region7: #{tpu_custom_call.1} parent=1 // pred_check_branch
      %21 = sbr.rel (0) target = $region9
    $region8: #{tpu_custom_call.1} parent=1 // pred_region
      %s23 = ssub.s32 512, 512
      %24 = vsyncadd [#allocation6], %s23
      %s25 = sshll.u32 [#allocation5], 4
      %s26 = int_to_ptr.vmem [resolvable:$true] %s25
      %31 = dma.hbm_to_vmem [thread:$0]  %s1, 512, %s26, [#allocation6], 128, 128, 8
    $region9: #{tpu_custom_call.1} parent=1 // pred_fallthru
      _
    // Predicated region
    $region10: #{tpu_custom_call.1} parent=1 // pred_check
      _
    $region11: #{tpu_custom_call.1} parent=1 // pred_check_branch
      %33 = sbr.rel (0) target = $region13
    $region12: #{tpu_custom_call.1} parent=1 // pred_region
      %34 = dma.done [#allocation3], 128
    $region13: #{tpu_custom_call.1} parent=1 // pred_fallthru
      _
    // Predicated region
    $region14: #{tpu_custom_call.1} parent=1 // pred_check
      _
    $region15: #{tpu_custom_call.1} parent=1 // pred_check_branch
      %36 = sbr.rel (0) target = $region17
    $region16: #{tpu_custom_call.1} parent=1 // pred_region
      %37 = dma.done [#allocation6], 512
    $region17: #{tpu_custom_call.1} parent=1 // pred_fallthru
      _
    %v38 = vld [vmem:[#allocation2] sm:$0xff]
    %v39 = vld [vmem:[#allocation5] sm:$0xff]
    %v40 = vld [vmem:[#allocation5 + $0x8] sm:$0xff]
    %v41 = vld [vmem:[#allocation5 + $0x10] sm:$0xff]
    %v42 = vld [vmem:[#allocation5 + $0x18] sm:$0x7]
    %vm43 = vcmask 220160
    %v45 = vsel %vm43, %v38, 0
    %vm47 = vcmask 1042432
    %v49 = vsel %vm47, %v42, 0
    %51 = vmatprep.subr.mxu0 0.0
    %52 = vmatpush1.msra.mxu0 %v39
    %53 = vmatprep.subr.mxu0 0.0
    %54 = vmatpush1.msra.mxu0 %v40
    %55 = vmatprep.subr.mxu0 0.0
    %56 = vmatpush1.msra.mxu0 %v41
    %57 = vmatprep.subr.mxu0 0.0
    %58 = vmatpush1.msra.mxu0 %v49
    %59 = vmatprep.subr.mxu0 0.0
    %60 = vmatpush1.msra.mxu0 0.0
    %61 = vmatprep.subr.mxu0 0.0
    %62 = vmatpush1.msra.mxu0 0.0
    %63 = vmatprep.subr.mxu0 0.0
    %64 = vmatpush1.msra.mxu0 0.0
    %65 = vmatprep.subr.mxu0 0.0
    %66 = vmatpush1.msra.mxu0 0.0
    %67 = vmatprep.subr.mxu0 0.0
    %68 = vmatpush1.msra.mxu0 0.0
    %69 = vmatprep.subr.mxu0 0.0
    %70 = vmatpush1.msra.mxu0 0.0
    %71 = vmatprep.subr.mxu0 0.0
    %72 = vmatpush1.msra.mxu0 0.0
    %73 = vmatprep.subr.mxu0 0.0
    %74 = vmatpush1.msra.mxu0 0.0
    %75 = vmatprep.subr.mxu0 0.0
    %76 = vmatpush1.msra.mxu0 0.0
    %77 = vmatprep.subr.mxu0 0.0
    %78 = vmatpush1.msra.mxu0 0.0
    %79 = vmatprep.subr.mxu0 0.0
    %80 = vmatpush1.msra.mxu0 0.0
    %81 = vmatprep.subr.mxu0 0.0
    %82 = vmatpush1.msra.mxu0 0.0
    %83 = vmatprep.subr.mxu0 0.0
    %84 = vmatpush1.msra.mxu0 0.0
    %85 = vmatprep.subr.mxu0 0.0
    %86 = vmatpush1.msra.mxu0 0.0
    %87 = vmatprep.subr.mxu0 0.0
    %88 = vmatpush1.msra.mxu0 0.0
    %89 = vmatprep.subr.mxu0 0.0
    %90 = vmatpush1.msra.mxu0 0.0
    %91 = vmatprep.subr.mxu0 0.0
    %92 = vmatpush1.msra.mxu0 0.0
    %93 = vmatprep.subr.mxu0 0.0
    %94 = vmatpush1.msra.mxu0 0.0
    %95 = vmatprep.subr.mxu0 0.0
    %96 = vmatpush1.msra.mxu0 0.0
    %97 = vmatprep.subr.mxu0 0.0
    %98 = vmatpush1.msra.mxu0 0.0
    %99 = vmatprep.subr.mxu0 0.0
    %100 = vmatpush1.msra.mxu0 0.0
    %101 = vmatprep.subr.mxu0 0.0
    %102 = vmatpush1.msra.mxu0 0.0
    %103 = vmatprep.subr.mxu0 0.0
    %104 = vmatpush1.msra.mxu0 0.0
    %105 = vmatprep.subr.mxu0 0.0
    %106 = vmatpush1.msra.mxu0 0.0
    %107 = vmatprep.subr.mxu0 0.0
    %108 = vmatpush1.msra.mxu0 0.0
    %109 = vmatprep.subr.mxu0 0.0
    %110 = vmatpush1.msra.mxu0 0.0
    %111 = vmatprep.subr.mxu0 0.0
    %112 = vmatpush1.msra.mxu0 0.0
    %113 = vmatprep.subr.mxu0 0.0
    %114 = vmatpush1.msra.mxu0 0.0
    %115 = vmatprep.mubr.f32.mxu0 0.0
    %116 = vmatmul.mubr.f32.gmra.mrb[0].mxu0 %v45
    %v117 = vpop.f32.mrb[0].mxu0
    %v118 = vadd.f32 0.0, %v117
    %v119 = vpop.f32.mrb[0].mxu0
    %120 = vdwg.mxu0
    %121 = vst.msk [vmem:[#allocation7] sm:$0xff] %vm43, %v118
    // Predicated region
    $region18: #{tpu_custom_call.1} parent=1 // pred_check
      _
    $region19: #{tpu_custom_call.1} parent=1 // pred_check_branch
      %123 = sbr.rel (0) target = $region21
    $region20: #{tpu_custom_call.1} parent=1 // pred_region
      %s125 = ssub.s32 128, 128
      %126 = vsyncadd [#allocation4], %s125
      %s128 = sshll.u32 [#allocation7], 4
      %s129 = int_to_ptr.vmem [resolvable:$true] %s128
      %131 = dma.vmem_to_hbm [thread:$0]  %s129, 128, %s2, [#allocation4]
    $region21: #{tpu_custom_call.1} parent=1 // pred_fallthru
      _
    // Predicated region
    $region22: #{tpu_custom_call.1} parent=1 // pred_check
      _
    $region23: #{tpu_custom_call.1} parent=1 // pred_check_branch
      %133 = sbr.rel (0) target = $region25
    $region24: #{tpu_custom_call.1} parent=1 // pred_region
      %134 = dma.done [#allocation4], 128
    $region25: #{tpu_custom_call.1} parent=1 // pred_fallthru
      _
    %135 = vsyncpa [#allocation3], 1
    %136 = vsyncpa [#allocation6], 1
    %137 = vsyncpa [#allocation4], 1

</llo_original>
